<compile_context>
chip_gen: v6e
topology: v6e:2x2x1
jax: 0.10.0
libtpu: 0.0.40
codegen_flags: <defaults>
</compile_context>

<pallas_src>
import jax
import jax.numpy as jnp
from jax import lax
from jax.experimental import pallas as pl
from jax.experimental.pallas import tpu as pltpu

BN_EPS = 1e-5  # nn.BatchNorm1d default


def encoder_head_kernel(x_ref, w_ref, gb_ref, o_ref):
    """Fused Linear (no bias; BN cancels it) + BatchNorm1d (batch statistics).

    x_ref:  [B, C_in]  f32  (cast to bf16 in-kernel for the MXU)
    w_ref:  [C_in, E]  bf16 (pre-transposed PyTorch weight, stored bf16)
    gb_ref: [2, E]     f32  (row 0 = gamma, row 1 = beta)
    o_ref:  [B, E]     f32
    """
    x_bf16 = x_ref[...].astype(jnp.bfloat16)
    # Full matmul on the MXU, accumulate in f32.
    y = jnp.dot(x_bf16, w_ref[...], preferred_element_type=jnp.float32)

    # BatchNorm1d (training mode): biased batch mean / variance over B.
    mean = jnp.mean(y, axis=0, keepdims=True)                 # [1, E]
    centered = y - mean
    var = jnp.mean(centered * centered, axis=0, keepdims=True)
    inv_std = lax.rsqrt(var + BN_EPS)

    # Fold the BN affine into a single per-feature scale/shift.
    scale = gb_ref[0:1, :] * inv_std                          # gamma / std
    shift = gb_ref[1:2, :] - scale * mean                     # beta - scale*mean
    o_ref[...] = (y * scale + shift).astype(o_ref.dtype)


@jax.jit
def encoder_forward(backbone_features, w_bf16, gb):
    """backbone_features: [B, C, 1, 1] (NCHW resnet output) -> [B, embed].

    w_bf16: [C_in, E] bf16 (cast once at parameter init, not per call)
    gb:     [2, E]    f32  (gamma/beta, pre-merged at parameter init)
    """
    B = backbone_features.shape[0]
    x = backbone_features.reshape(B, -1)                       # [B, C_in] f32
    E = w_bf16.shape[1]

    vmem = pltpu.MemorySpace.VMEM
    return pl.pallas_call(
        encoder_head_kernel,
        out_shape=jax.ShapeDtypeStruct((B, E), jnp.float32),
        in_specs=[
            pl.BlockSpec(memory_space=vmem),                   # x  (full, f32)
            pl.BlockSpec(memory_space=vmem),                   # W  (full, bf16)
            pl.BlockSpec(memory_space=vmem),                   # gamma/beta
        ],
        out_specs=pl.BlockSpec(memory_space=vmem),
    )(x, w_bf16, gb)


def reference_forward(backbone_features, w_t, b, gamma, beta):
    """Pure-JAX reference (includes the Linear bias, which BN cancels).

    Uses the same bf16 quantization of x and W as the kernel so the
    comparison isolates kernel correctness (accumulation order only).
    """
    B = backbone_features.shape[0]
    x = backbone_features.reshape(B, -1)
    xq = x.astype(jnp.bfloat16).astype(jnp.float32)
    wq = w_t.astype(jnp.bfloat16).astype(jnp.float32)
    y = jnp.dot(xq, wq, precision=lax.Precision.HIGHEST) + b
    mean = jnp.mean(y, axis=0, keepdims=True)
    var = jnp.mean((y - mean) ** 2, axis=0, keepdims=True)
    return gamma * (y - mean) * lax.rsqrt(var + BN_EPS) + beta


if __name__ == "__main__":
    # Small-but-consistent shapes: resnet152.fc.in_features == 2048.
    B = 8
    C_IN = 2048       # ResNet-152 feature width
    EMBED = 128       # embed_size

    key = jax.random.PRNGKey(0)
    k_feat, k_w, k_b = jax.random.split(key, 3)

    # Stand-in for `self.resnet(images)` output: [B, 2048, 1, 1].
    backbone_features = jax.random.normal(k_feat, (B, C_IN, 1, 1), jnp.float32)

    # Deterministic parameter init (synthetic; not a checkpoint).
    # PyTorch linear weight is [embed, C_in]; pre-transpose to [C_in, embed].
    w_pt = 0.02 * jax.random.normal(k_w, (EMBED, C_IN), jnp.float32)
    w_t = jnp.transpose(w_pt)                                  # [C_in, embed]
    b = 0.01 * jax.random.normal(k_b, (1, EMBED), jnp.float32)
    gamma = jnp.ones((1, EMBED), jnp.float32)                  # BatchNorm1d init
    beta = jnp.zeros((1, EMBED), jnp.float32)

    # One-time parameter preprocessing (outside the per-call path):
    #   * store W in bf16,
    #   * merge gamma/beta into one [2, E] slab.
    w_bf16 = w_t.astype(jnp.bfloat16)                          # [C_in, embed]
    gb = jnp.concatenate([gamma, beta], axis=0)                # [2, embed]

    out = encoder_forward(backbone_features, w_bf16, gb)
    out = jax.block_until_ready(out)

    ref = reference_forward(backbone_features, w_t, b, gamma, beta)
    assert out.shape == (B, EMBED)
    # Tolerance loosened vs. 1e-3: MXU f32 accumulation order over K=2048
    # differs from the HIGHEST-precision XLA reference.
    assert jnp.allclose(out, ref, atol=1e-2, rtol=1e-2), "mismatch vs reference"

    print("KERNEL_OK")
</pallas_src>

<mosaic_0001>
module attributes {stable_mosaic.version = 11 : i64} {
  func.func @encoder_head_kernel(%arg0: memref<8x2048xf32, #tpu.memory_space<vmem>>, %arg1: memref<2048x128xbf16, #tpu.memory_space<vmem>>, %arg2: memref<2x128xf32, #tpu.memory_space<vmem>>, %arg3: memref<8x128xf32, #tpu.memory_space<vmem>>) attributes {dimension_semantics = [], scalar_prefetch = 0 : i64, scratch_operands = 0 : i64, tpu.core_type = #tpu.core_type<tc>} {
    %c0 = arith.constant 0 : index
    %c0_0 = arith.constant 0 : index
    %0 = vector.load %arg0[%c0, %c0_0] : memref<8x2048xf32, #tpu.memory_space<vmem>>, vector<8x2048xf32>
    %1 = arith.truncf %0 : vector<8x2048xf32> to vector<8x2048xbf16>
    %c0_1 = arith.constant 0 : index
    %c0_2 = arith.constant 0 : index
    %2 = vector.load %arg1[%c0_1, %c0_2] : memref<2048x128xbf16, #tpu.memory_space<vmem>>, vector<2048x128xbf16>
    %cst = arith.constant dense<0.000000e+00> : vector<8x128xf32>
    %3 = tpu.matmul %1, %2, %cst {dimension_numbers = #tpu.dot_dimension_numbers<[1], [0], [0], [1], [0, 0, 1, 1], [], []>} : vector<8x2048xbf16>, vector<2048x128xbf16>, vector<8x128xf32> -> vector<8x128xf32>
    %cst_3 = arith.constant dense<0.000000e+00> : vector<128xf32>
    %4 = vector.multi_reduction <add>, %3, %cst_3 [0] : vector<8x128xf32> to vector<128xf32>
    %5 = vector.shape_cast %4 : vector<128xf32> to vector<1x128xf32>
    %cst_4 = arith.constant 8.000000e+00 : f32
    %6 = vector.broadcast %cst_4 : f32 to vector<1x128xf32>
    %7 = arith.divf %5, %6 : vector<1x128xf32>
    %8 = vector.broadcast %7 : vector<1x128xf32> to vector<8x128xf32>
    %9 = arith.subf %3, %8 : vector<8x128xf32>
    %10 = arith.mulf %9, %9 : vector<8x128xf32>
    %cst_5 = arith.constant dense<0.000000e+00> : vector<128xf32>
    %11 = vector.multi_reduction <add>, %10, %cst_5 [0] : vector<8x128xf32> to vector<128xf32>
    %12 = vector.shape_cast %11 : vector<128xf32> to vector<1x128xf32>
    %cst_6 = arith.constant 8.000000e+00 : f32
    %13 = vector.broadcast %cst_6 : f32 to vector<1x128xf32>
    %14 = arith.divf %12, %13 : vector<1x128xf32>
    %cst_7 = arith.constant 9.99999974E-6 : f32
    %15 = vector.broadcast %cst_7 : f32 to vector<1x128xf32>
    %16 = arith.addf %14, %15 : vector<1x128xf32>
    %17 = math.rsqrt %16 : vector<1x128xf32>
    %c0_8 = arith.constant 0 : index
    %c0_9 = arith.constant 0 : index
    %18 = vector.load %arg2[%c0_8, %c0_9] : memref<2x128xf32, #tpu.memory_space<vmem>>, vector<1x128xf32>
    %19 = arith.mulf %18, %17 : vector<1x128xf32>
    %c1 = arith.constant 1 : index
    %c0_10 = arith.constant 0 : index
    %20 = vector.load %arg2[%c1, %c0_10] : memref<2x128xf32, #tpu.memory_space<vmem>>, vector<1x128xf32>
    %21 = arith.mulf %19, %7 : vector<1x128xf32>
    %22 = arith.subf %20, %21 : vector<1x128xf32>
    %23 = vector.broadcast %19 : vector<1x128xf32> to vector<8x128xf32>
    %24 = arith.mulf %3, %23 : vector<8x128xf32>
    %25 = vector.broadcast %22 : vector<1x128xf32> to vector<8x128xf32>
    %26 = arith.addf %24, %25 : vector<8x128xf32>
    %c0_11 = arith.constant 0 : index
    %c0_12 = arith.constant 0 : index
    %27 = vector.load %arg3[%c0_11, %c0_12] : memref<8x128xf32, #tpu.memory_space<vmem>>, vector<8x128xf32>
    tpu.vector_store %arg3[%c0_11, %c0_12], %26 {strides = array<i32>} : memref<8x128xf32, #tpu.memory_space<vmem>>, vector<8x128xf32>,
    return
  }
}

</mosaic_0001>

<llo_original>
// kernel: encoder_forward.1
$region0: #{encoder_forward.1}
  #allocation0 [shape = 'u32[]', space=smem, size = 0x4, offset = 0x4, fixed_abs, tag = 'smem constant byte address 0x4 - core index']
  #allocation1 [shape = 'u32[144,128]{1,0:T(1,128)}', space=vmem, size = 0x12000, scoped, tag = 'internal scratch']
  %s0 = inlined_call_operand.vmem [shape: f32[8,2048], index: 0, kind: input, shape index: {}]
  %s1 = inlined_call_operand.hbm [shape: bf16[2048,128], index: 1, kind: input, shape index: {}]
  %s2 = inlined_call_operand.vmem [shape: f32[2,128], index: 2, kind: input, shape index: {}]
  %s3 = inlined_call_operand.hbm [shape: f32[8,128], index: 3, kind: output, shape index: {}]
  %s4 = sld [smem:[#allocation0]]
  $region26: #{encoder_forward.1} parent=0
    _
  %s6 = ssub.s32 1, %s4
  %s7 = scalar_select 0, %s6, %s4
  $region1: #{encoder_forward.1} parent=0
    #allocation2 [shape = 'u8[524288]{0}', space=vmem, size = 0x80000, scoped, tag = 'input window, operand 1, single buffered']
    #allocation3 [shape = 's32[1]{0}', space=sflag, size = 0x4, scoped, tag = 'scoped memory for encoder_forward.1']
    #allocation4 [shape = 's32[1]{0}', space=sflag, size = 0x4, scoped, tag = 'scoped memory for encoder_forward.1']
    #allocation5 [shape = 'u8[4096]{0}', space=vmem, size = 0x1000, scoped, tag = 'output window, operand 0, single buffered']
    %8 = vsyncpa [#allocation3], 0
    %9 = vsyncpa [#allocation4], 0
    // Predicated region
    $region2: #{encoder_forward.1} parent=1 // pred_check
      _
    $region3: #{encoder_forward.1} parent=1 // pred_check_branch
      %11 = sbr.rel (0) target = $region5
    $region4: #{encoder_forward.1} parent=1 // pred_region
      _
    $region5: #{encoder_forward.1} parent=1 // pred_fallthru
      _
    // Predicated region
    $region6: #{encoder_forward.1} parent=1 // pred_check
      _
    $region7: #{encoder_forward.1} parent=1 // pred_check_branch
      %13 = sbr.rel (0) target = $region9
    $region8: #{encoder_forward.1} parent=1 // pred_region
      %s15 = ssub.s32 16384, 16384
      %16 = vsyncadd [#allocation3], %s15
      %s17 = sshll.u32 [#allocation2], 4
      %s18 = int_to_ptr.vmem [resolvable:$true] %s17
      %23 = dma.hbm_to_vmem [thread:$0]  %s1, 16384, %s18, [#allocation3], 64, 64, 4
    $region9: #{encoder_forward.1} parent=1 // pred_fallthru
      _
    // Predicated region
    $region10: #{encoder_forward.1} parent=1 // pred_check
      _
    $region11: #{encoder_forward.1} parent=1 // pred_check_branch
      %25 = sbr.rel (0) target = $region13
    $region12: #{encoder_forward.1} parent=1 // pred_region
      _
    $region13: #{encoder_forward.1} parent=1 // pred_fallthru
      _
    // Predicated region
    $region14: #{encoder_forward.1} parent=1 // pred_check
      _
    $region15: #{encoder_forward.1} parent=1 // pred_check_branch
      %27 = sbr.rel (0) target = $region17
    $region16: #{encoder_forward.1} parent=1 // pred_region
      %28 = dma.done [#allocation3], 16384
    $region17: #{encoder_forward.1} parent=1 // pred_fallthru
      _
    %v30 = vld [vmem:[%s0] sm:$0xff]
    %v31 = vld [vmem:[%s0 + $0x8] sm:$0xff]
    %v32 = vld [vmem:[%s0 + $0x10] sm:$0xff]
    %v33 = vld [vmem:[%s0 + $0x18] sm:$0xff]
    %v34 = vld [vmem:[%s0 + $0x20] sm:$0xff]
    %v35 = vld [vmem:[%s0 + $0x28] sm:$0xff]
    %v36 = vld [vmem:[%s0 + $0x30] sm:$0xff]
    %v37 = vld [vmem:[%s0 + $0x38] sm:$0xff]
    %v38 = vld [vmem:[%s0 + $0x40] sm:$0xff]
    %v39 = vld [vmem:[%s0 + $0x48] sm:$0xff]
    %v40 = vld [vmem:[%s0 + $0x50] sm:$0xff]
    %v41 = vld [vmem:[%s0 + $0x58] sm:$0xff]
    %v42 = vld [vmem:[%s0 + $0x60] sm:$0xff]
    %v43 = vld [vmem:[%s0 + $0x68] sm:$0xff]
    %v44 = vld [vmem:[%s0 + $0x70] sm:$0xff]
    %v45 = vld [vmem:[%s0 + $0x78] sm:$0xff]
    %v46 = vpack.c.bf16 %v30, %v30
    %v47 = vpack.c.bf16 %v31, %v31
    %v48 = vpack.c.bf16 %v32, %v32
    %v49 = vpack.c.bf16 %v33, %v33
    %v50 = vpack.c.bf16 %v34, %v34
    %v51 = vpack.c.bf16 %v35, %v35
    %v52 = vpack.c.bf16 %v36, %v36
    %v53 = vpack.c.bf16 %v37, %v37
    %v54 = vpack.c.bf16 %v38, %v38
    %v55 = vpack.c.bf16 %v39, %v39
    %v56 = vpack.c.bf16 %v40, %v40
    %v57 = vpack.c.bf16 %v41, %v41
    %v58 = vpack.c.bf16 %v42, %v42
    %v59 = vpack.c.bf16 %v43, %v43
    %v60 = vpack.c.bf16 %v44, %v44
    %v61 = vpack.c.bf16 %v45, %v45
    %v62 = vld [vmem:[#allocation2] sm:$0xf]
    %v63 = vld [vmem:[#allocation2 + $0x4] sm:$0xf]
    %v64 = vld [vmem:[#allocation2 + $0x8] sm:$0xf]
    %v65 = vld [vmem:[#allocation2 + $0xc] sm:$0xf]
    %v66 = vld [vmem:[#allocation2 + $0x10] sm:$0xf]
    %v67 = vld [vmem:[#allocation2 + $0x14] sm:$0xf]
    %v68 = vld [vmem:[#allocation2 + $0x18] sm:$0xf]
    %v69 = vld [vmem:[#allocation2 + $0x1c] sm:$0xf]
    %v70 = vld [vmem:[#allocation2 + $0x20] sm:$0xf]
    %v71 = vld [vmem:[#allocation2 + $0x24] sm:$0xf]
    %v72 = vld [vmem:[#allocation2 + $0x28] sm:$0xf]
    %v73 = vld [vmem:[#allocation2 + $0x2c] sm:$0xf]
    %v74 = vld [vmem:[#allocation2 + $0x30] sm:$0xf]
    %v75 = vld [vmem:[#allocation2 + $0x34] sm:$0xf]
    %v76 = vld [vmem:[#allocation2 + $0x38] sm:$0xf]
    %v77 = vld [vmem:[#allocation2 + $0x3c] sm:$0xf]
    %v78 = vld [vmem:[#allocation2 + $0x40] sm:$0xf]
    %v79 = vld [vmem:[#allocation2 + $0x44] sm:$0xf]
    %v80 = vld [vmem:[#allocation2 + $0x48] sm:$0xf]
    %v81 = vld [vmem:[#allocation2 + $0x4c] sm:$0xf]
    %v82 = vld [vmem:[#allocation2 + $0x50] sm:$0xf]
    %v83 = vld [vmem:[#allocation2 + $0x54] sm:$0xf]
    %v84 = vld [vmem:[#allocation2 + $0x58] sm:$0xf]
    %v85 = vld [vmem:[#allocation2 + $0x5c] sm:$0xf]
    %v86 = vld [vmem:[#allocation2 + $0x60] sm:$0xf]
    %v87 = vld [vmem:[#allocation2 + $0x64] sm:$0xf]
    %v88 = vld [vmem:[#allocation2 + $0x68] sm:$0xf]
    %v89 = vld [vmem:[#allocation2 + $0x6c] sm:$0xf]
    %v90 = vld [vmem:[#allocation2 + $0x70] sm:$0xf]
    %v91 = vld [vmem:[#allocation2 + $0x74] sm:$0xf]
    %v92 = vld [vmem:[#allocation2 + $0x78] sm:$0xf]
    %v93 = vld [vmem:[#allocation2 + $0x7c] sm:$0xf]
    %v94 = vld [vmem:[#allocation2 + $0x80] sm:$0xf]
    %v95 = vld [vmem:[#allocation2 + $0x84] sm:$0xf]
    %v96 = vld [vmem:[#allocation2 + $0x88] sm:$0xf]
    %v97 = vld [vmem:[#allocation2 + $0x8c] sm:$0xf]
    %v98 = vld [vmem:[#allocation2 + $0x90] sm:$0xf]
    %v99 = vld [vmem:[#allocation2 + $0x94] sm:$0xf]
    %v100 = vld [vmem:[#allocation2 + $0x98] sm:$0xf]
    %v101 = vld [vmem:[#allocation2 + $0x9c] sm:$0xf]
    %v102 = vld [vmem:[#allocation2 + $0xa0] sm:$0xf]
    %v103 = vld [vmem:[#allocation2 + $0xa4] sm:$0xf]
    %v104 = vld [vmem:[#allocation2 + $0xa8] sm:$0xf]
    %v105 = vld [vmem:[#allocation2 + $0xac] sm:$0xf]
    %v106 = vld [vmem:[#allocation2 + $0xb0] sm:$0xf]
    %v107 = vld [vmem:[#allocation2 + $0xb4] sm:$0xf]
    %v108 = vld [vmem:[#allocation2 + $0xb8] sm:$0xf]
    %v109 = vld [vmem:[#allocation2 + $0xbc] sm:$0xf]
    %v110 = vld [vmem:[#allocation2 + $0xc0] sm:$0xf]
    %v111 = vld [vmem:[#allocation2 + $0xc4] sm:$0xf]
    %v112 = vld [vmem:[#allocation2 + $0xc8] sm:$0xf]
    %v113 = vld [vmem:[#allocation2 + $0xcc] sm:$0xf]
    %v114 = vld [vmem:[#allocation2 + $0xd0] sm:$0xf]
    %v115 = vld [vmem:[#allocation2 + $0xd4] sm:$0xf]
    %v116 = vld [vmem:[#allocation2 + $0xd8] sm:$0xf]
    %v117 = vld [vmem:[#allocation2 + $0xdc] sm:$0xf]
    %v118 = vld [vmem:[#allocation2 + $0xe0] sm:$0xf]
    %v119 = vld [vmem:[#allocation2 + $0xe4] sm:$0xf]
    %v120 = vld [vmem:[#allocation2 + $0xe8] sm:$0xf]
    %v121 = vld [vmem:[#allocation2 + $0xec] sm:$0xf]
    %v122 = vld [vmem:[#allocation2 + $0xf0] sm:$0xf]
    %v123 = vld [vmem:[#allocation2 + $0xf4] sm:$0xf]
    %v124 = vld [vmem:[#allocation2 + $0xf8] sm:$0xf]
    %v125 = vld [vmem:[#allocation2 + $0xfc] sm:$0xf]
    %v126 = vld [vmem:[#allocation2 + $0x100] sm:$0xf]
    %v127 = vld [vmem:[#allocation2 + $0x104] sm:$0xf]
    %v128 = vld [vmem:[#allocation2 + $0x108] sm:$0xf]
    %v129 = vld [vmem:[#allocation2 + $0x10c] sm:$0xf]
    %v130 = vld [vmem:[#allocation2 + $0x110] sm:$0xf]
    %v131 = vld [vmem:[#allocation2 + $0x114] sm:$0xf]
    %v132 = vld [vmem:[#allocation2 + $0x118] sm:$0xf]
    %v133 = vld [vmem:[#allocation2 + $0x11c] sm:$0xf]
    %v134 = vld [vmem:[#allocation2 + $0x120] sm:$0xf]
    %v135 = vld [vmem:[#allocation2 + $0x124] sm:$0xf]
    %v136 = vld [vmem:[#allocation2 + $0x128] sm:$0xf]
    %v137 = vld [vmem:[#allocation2 + $0x12c] sm:$0xf]
    %v138 = vld [vmem:[#allocation2 + $0x130] sm:$0xf]
    %v139 = vld [vmem:[#allocation2 + $0x134] sm:$0xf]
    %v140 = vld [vmem:[#allocation2 + $0x138] sm:$0xf]
    %v141 = vld [vmem:[#allocation2 + $0x13c] sm:$0xf]
    %v142 = vld [vmem:[#allocation2 + $0x140] sm:$0xf]
    %v143 = vld [vmem:[#allocation2 + $0x144] sm:$0xf]
    %v144 = vld [vmem:[#allocation2 + $0x148] sm:$0xf]
    %v145 = vld [vmem:[#allocation2 + $0x14c] sm:$0xf]
    %v146 = vld [vmem:[#allocation2 + $0x150] sm:$0xf]
    %v147 = vld [vmem:[#allocation2 + $0x154] sm:$0xf]
    %v148 = vld [vmem:[#allocation2 + $0x158] sm:$0xf]
    %v149 = vld [vmem:[#allocation2 + $0x15c] sm:$0xf]
    %v150 = vld [vmem:[#allocation2 + $0x160] sm:$0xf]
    %v151 = vld [vmem:[#allocation2 + $0x164] sm:$0xf]
    %v152 = vld [vmem:[#allocation2 + $0x168] sm:$0xf]
    %v153 = vld [vmem:[#allocation2 + $0x16c] sm:$0xf]
    %v154 = vld [vmem:[#allocation2 + $0x170] sm:$0xf]
    %v155 = vld [vmem:[#allocation2 + $0x174] sm:$0xf]
    %v156 = vld [vmem:[#allocation2 + $0x178] sm:$0xf]
    %v157 = vld [vmem:[#allocation2 + $0x17c] sm:$0xf]
    %v158 = vld [vmem:[#allocation2 + $0x180] sm:$0xf]
    %v159 = vld [vmem:[#allocation2 + $0x184] sm:$0xf]
    %v160 = vld [vmem:[#allocation2 + $0x188] sm:$0xf]
    %v161 = vld [vmem:[#allocation2 + $0x18c] sm:$0xf]
    %v162 = vld [vmem:[#allocation2 + $0x190] sm:$0xf]
    %v163 = vld [vmem:[#allocation2 + $0x194] sm:$0xf]
    %v164 = vld [vmem:[#allocation2 + $0x198] sm:$0xf]
    %v165 = vld [vmem:[#allocation2 + $0x19c] sm:$0xf]
    %v166 = vld [vmem:[#allocation2 + $0x1a0] sm:$0xf]
    %v167 = vld [vmem:[#allocation2 + $0x1a4] sm:$0xf]
    %v168 = vld [vmem:[#allocation2 + $0x1a8] sm:$0xf]
    %v169 = vld [vmem:[#allocation2 + $0x1ac] sm:$0xf]
    %v170 = vld [vmem:[#allocation2 + $0x1b0] sm:$0xf]
    %v171 = vld [vmem:[#allocation2 + $0x1b4] sm:$0xf]
    %v172 = vld [vmem:[#allocation2 + $0x1b8] sm:$0xf]
    %v173 = vld [vmem:[#allocation2 + $0x1bc] sm:$0xf]
    %v174 = vld [vmem:[#allocation2 + $0x1c0] sm:$0xf]
    %v175 = vld [vmem:[#allocation2 + $0x1c4] sm:$0xf]
    %v176 = vld [vmem:[#allocation2 + $0x1c8] sm:$0xf]
    %v177 = vld [vmem:[#allocation2 + $0x1cc] sm:$0xf]
    %v178 = vld [vmem:[#allocation2 + $0x1d0] sm:$0xf]
    %v179 = vld [vmem:[#allocation2 + $0x1d4] sm:$0xf]
    %v180 = vld [vmem:[#allocation2 + $0x1d8] sm:$0xf]
    %v181 = vld [vmem:[#allocation2 + $0x1dc] sm:$0xf]
    %v182 = vld [vmem:[#allocation2 + $0x1e0] sm:$0xf]
    %v183 = vld [vmem:[#allocation2 + $0x1e4] sm:$0xf]
    %v184 = vld [vmem:[#allocation2 + $0x1e8] sm:$0xf]
    %v185 = vld [vmem:[#allocation2 + $0x1ec] sm:$0xf]
    %v186 = vld [vmem:[#allocation2 + $0x1f0] sm:$0xf]
    %v187 = vld [vmem:[#allocation2 + $0x1f4] sm:$0xf]
    %v188 = vld [vmem:[#allocation2 + $0x1f8] sm:$0xf]
    %v189 = vld [vmem:[#allocation2 + $0x1fc] sm:$0xf]
    %v190 = vld [vmem:[#allocation2 + $0x200] sm:$0xf]
    %v191 = vld [vmem:[#allocation2 + $0x204] sm:$0xf]
    %v192 = vld [vmem:[#allocation2 + $0x208] sm:$0xf]
    %v193 = vld [vmem:[#allocation2 + $0x20c] sm:$0xf]
    %v194 = vld [vmem:[#allocation2 + $0x210] sm:$0xf]
    %v195 = vld [vmem:[#allocation2 + $0x214] sm:$0xf]
    %v196 = vld [vmem:[#allocation2 + $0x218] sm:$0xf]
    %v197 = vld [vmem:[#allocation2 + $0x21c] sm:$0xf]
    %v198 = vld [vmem:[#allocation2 + $0x220] sm:$0xf]
    %v199 = vld [vmem:[#allocation2 + $0x224] sm:$0xf]
    %v200 = vld [vmem:[#allocation2 + $0x228] sm:$0xf]
    %v201 = vld [vmem:[#allocation2 + $0x22c] sm:$0xf]
    %v202 = vld [vmem:[#allocation2 + $0x230] sm:$0xf]
    %v203 = vld [vmem:[#allocation2 + $0x234] sm:$0xf]
    %v204 = vld [vmem:[#allocation2 + $0x238] sm:$0xf]
    %v205 = vld [vmem:[#allocation2 + $0x23c] sm:$0xf]
    %v206 = vld [vmem:[#allocation2 + $0x240] sm:$0xf]
    %v207 = vld [vmem:[#allocation2 + $0x244] sm:$0xf]
    %v208 = vld [vmem:[#allocation2 + $0x248] sm:$0xf]
    %v209 = vld [vmem:[#allocation2 + $0x24c] sm:$0xf]
    %v210 = vld [vmem:[#allocation2 + $0x250] sm:$0xf]
    %v211 = vld [vmem:[#allocation2 + $0x254] sm:$0xf]
    %v212 = vld [vmem:[#allocation2 + $0x258] sm:$0xf]
    %v213 = vld [vmem:[#allocation2 + $0x25c] sm:$0xf]
    %v214 = vld [vmem:[#allocation2 + $0x260] sm:$0xf]
    %v215 = vld [vmem:[#allocation2 + $0x264] sm:$0xf]
    %v216 = vld [vmem:[#allocation2 + $0x268] sm:$0xf]
    %v217 = vld [vmem:[#allocation2 + $0x26c] sm:$0xf]
    %v218 = vld [vmem:[#allocation2 + $0x270] sm:$0xf]
    %v219 = vld [vmem:[#allocation2 + $0x274] sm:$0xf]
    %v220 = vld [vmem:[#allocation2 + $0x278] sm:$0xf]
    %v221 = vld [vmem:[#allocation2 + $0x27c] sm:$0xf]
    %v222 = vld [vmem:[#allocation2 + $0x280] sm:$0xf]
    %v223 = vld [vmem:[#allocation2 + $0x284] sm:$0xf]
    %v224 = vld [vmem:[#allocation2 + $0x288] sm:$0xf]
    %v225 = vld [vmem:[#allocation2 + $0x28c] sm:$0xf]
    %v226 = vld [vmem:[#allocation2 + $0x290] sm:$0xf]
    %v227 = vld [vmem:[#allocation2 + $0x294] sm:$0xf]
    %v228 = vld [vmem:[#allocation2 + $0x298] sm:$0xf]
    %v229 = vld [vmem:[#allocation2 + $0x29c] sm:$0xf]
    %v230 = vld [vmem:[#allocation2 + $0x2a0] sm:$0xf]
    %v231 = vld [vmem:[#allocation2 + $0x2a4] sm:$0xf]
    %v232 = vld [vmem:[#allocation2 + $0x2a8] sm:$0xf]
    %v233 = vld [vmem:[#allocation2 + $0x2ac] sm:$0xf]
    %v234 = vld [vmem:[#allocation2 + $0x2b0] sm:$0xf]
    %v235 = vld [vmem:[#allocation2 + $0x2b4] sm:$0xf]
    %v236 = vld [vmem:[#allocation2 + $0x2b8] sm:$0xf]
    %v237 = vld [vmem:[#allocation2 + $0x2bc] sm:$0xf]
    %v238 = vld [vmem:[#allocation2 + $0x2c0] sm:$0xf]
    %v239 = vld [vmem:[#allocation2 + $0x2c4] sm:$0xf]
    %v240 = vld [vmem:[#allocation2 + $0x2c8] sm:$0xf]
    %v241 = vld [vmem:[#allocation2 + $0x2cc] sm:$0xf]
    %v242 = vld [vmem:[#allocation2 + $0x2d0] sm:$0xf]
    %v243 = vld [vmem:[#allocation2 + $0x2d4] sm:$0xf]
    %v244 = vld [vmem:[#allocation2 + $0x2d8] sm:$0xf]
    %v245 = vld [vmem:[#allocation2 + $0x2dc] sm:$0xf]
    %v246 = vld [vmem:[#allocation2 + $0x2e0] sm:$0xf]
    %v247 = vld [vmem:[#allocation2 + $0x2e4] sm:$0xf]
    %v248 = vld [vmem:[#allocation2 + $0x2e8] sm:$0xf]
    %v249 = vld [vmem:[#allocation2 + $0x2ec] sm:$0xf]
    %v250 = vld [vmem:[#allocation2 + $0x2f0] sm:$0xf]
    %v251 = vld [vmem:[#allocation2 + $0x2f4] sm:$0xf]
    %v252 = vld [vmem:[#allocation2 + $0x2f8] sm:$0xf]
    %v253 = vld [vmem:[#allocation2 + $0x2fc] sm:$0xf]
    %v254 = vld [vmem:[#allocation2 + $0x300] sm:$0xf]
    %v255 = vld [vmem:[#allocation2 + $0x304] sm:$0xf]
    %v256 = vld [vmem:[#allocation2 + $0x308] sm:$0xf]
    %v257 = vld [vmem:[#allocation2 + $0x30c] sm:$0xf]
    %v258 = vld [vmem:[#allocation2 + $0x310] sm:$0xf]
    %v259 = vld [vmem:[#allocation2 + $0x314] sm:$0xf]
    %v260 = vld [vmem:[#allocation2 + $0x318] sm:$0xf]
    %v261 = vld [vmem:[#allocation2 + $0x31c] sm:$0xf]
    %v262 = vld [vmem:[#allocation2 + $0x320] sm:$0xf]
    %v263 = vld [vmem:[#allocation2 + $0x324] sm:$0xf]
    %v264 = vld [vmem:[#allocation2 + $0x328] sm:$0xf]
    %v265 = vld [vmem:[#allocation2 + $0x32c] sm:$0xf]
    %v266 = vld [vmem:[#allocation2 + $0x330] sm:$0xf]
    %v267 = vld [vmem:[#allocation2 + $0x334] sm:$0xf]
    %v268 = vld [vmem:[#allocation2 + $0x338] sm:$0xf]
    %v269 = vld [vmem:[#allocation2 + $0x33c] sm:$0xf]
    %v270 = vld [vmem:[#allocation2 + $0x340] sm:$0xf]
    %v271 = vld [vmem:[#allocation2 + $0x344] sm:$0xf]
    %v272 = vld [vmem:[#allocation2 + $0x348] sm:$0xf]
    %v273 = vld [vmem:[#allocation2 + $0x34c] sm:$0xf]
    %v274 = vld [vmem:[#allocation2 + $0x350] sm:$0xf]
    %v275 = vld [vmem:[#allocation2 + $0x354] sm:$0xf]
    %v276 = vld [vmem:[#allocation2 + $0x358] sm:$0xf]
    %v277 = vld [vmem:[#allocation2 + $0x35c] sm:$0xf]
    %v278 = vld [vmem:[#allocation2 + $0x360] sm:$0xf]
    %v279 = vld [vmem:[#allocation2 + $0x364] sm:$0xf]
    %v280 = vld [vmem:[#allocation2 + $0x368] sm:$0xf]
    %v281 = vld [vmem:[#allocation2 + $0x36c] sm:$0xf]
    %v282 = vld [vmem:[#allocation2 + $0x370] sm:$0xf]
    %v283 = vld [vmem:[#allocation2 + $0x374] sm:$0xf]
    %v284 = vld [vmem:[#allocation2 + $0x378] sm:$0xf]
    %v285 = vld [vmem:[#allocation2 + $0x37c] sm:$0xf]
    %v286 = vld [vmem:[#allocation2 + $0x380] sm:$0xf]
    %v287 = vld [vmem:[#allocation2 + $0x384] sm:$0xf]
    %v288 = vld [vmem:[#allocation2 + $0x388] sm:$0xf]
    %v289 = vld [vmem:[#allocation2 + $0x38c] sm:$0xf]
    %v290 = vld [vmem:[#allocation2 + $0x390] sm:$0xf]
    %v291 = vld [vmem:[#allocation2 + $0x394] sm:$0xf]
    %v292 = vld [vmem:[#allocation2 + $0x398] sm:$0xf]
    %v293 = vld [vmem:[#allocation2 + $0x39c] sm:$0xf]
    %v294 = vld [vmem:[#allocation2 + $0x3a0] sm:$0xf]
    %v295 = vld [vmem:[#allocation2 + $0x3a4] sm:$0xf]
    %v296 = vld [vmem:[#allocation2 + $0x3a8] sm:$0xf]
    %v297 = vld [vmem:[#allocation2 + $0x3ac] sm:$0xf]
    %v298 = vld [vmem:[#allocation2 + $0x3b0] sm:$0xf]
    %v299 = vld [vmem:[#allocation2 + $0x3b4] sm:$0xf]
    %v300 = vld [vmem:[#allocation2 + $0x3b8] sm:$0xf]
    %v301 = vld [vmem:[#allocation2 + $0x3bc] sm:$0xf]
    %v302 = vld [vmem:[#allocation2 + $0x3c0] sm:$0xf]
    %v303 = vld [vmem:[#allocation2 + $0x3c4] sm:$0xf]
    %v304 = vld [vmem:[#allocation2 + $0x3c8] sm:$0xf]
    %v305 = vld [vmem:[#allocation2 + $0x3cc] sm:$0xf]
    %v306 = vld [vmem:[#allocation2 + $0x3d0] sm:$0xf]
    %v307 = vld [vmem:[#allocation2 + $0x3d4] sm:$0xf]
    %v308 = vld [vmem:[#allocation2 + $0x3d8] sm:$0xf]
    %v309 = vld [vmem:[#allocation2 + $0x3dc] sm:$0xf]
    %v310 = vld [vmem:[#allocation2 + $0x3e0] sm:$0xf]
    %v311 = vld [vmem:[#allocation2 + $0x3e4] sm:$0xf]
    %v312 = vld [vmem:[#allocation2 + $0x3e8] sm:$0xf]
    %v313 = vld [vmem:[#allocation2 + $0x3ec] sm:$0xf]
    %v314 = vld [vmem:[#allocation2 + $0x3f0] sm:$0xf]
    %v315 = vld [vmem:[#allocation2 + $0x3f4] sm:$0xf]
    %v316 = vld [vmem:[#allocation2 + $0x3f8] sm:$0xf]
    %v317 = vld [vmem:[#allocation2 + $0x3fc] sm:$0xf]
    %v574 = vunpack.c.l.b16 %v62
    %v575 = vunpack.c.l.b16 %v63
    %v576 = vunpack.c.l.b16 %v64
    %v577 = vunpack.c.l.b16 %v65
    %v578 = vunpack.c.l.b16 %v66
    %v579 = vunpack.c.l.b16 %v67
    %v580 = vunpack.c.l.b16 %v68
    %v581 = vunpack.c.l.b16 %v69
    %v582 = vunpack.c.l.b16 %v70
    %v583 = vunpack.c.l.b16 %v71
    %v584 = vunpack.c.l.b16 %v72
    %v585 = vunpack.c.l.b16 %v73
    %v586 = vunpack.c.l.b16 %v74
    %v587 = vunpack.c.l.b16 %v75
    %v588 = vunpack.c.l.b16 %v76
    %v589 = vunpack.c.l.b16 %v77
    %v590 = vunpack.c.l.b16 %v78
    %v591 = vunpack.c.l.b16 %v79
    %v592 = vunpack.c.l.b16 %v80
    %v593 = vunpack.c.l.b16 %v81
    %v594 = vunpack.c.l.b16 %v82
    %v595 = vunpack.c.l.b16 %v83
    %v596 = vunpack.c.l.b16 %v84
    %v597 = vunpack.c.l.b16 %v85
    %v598 = vunpack.c.l.b16 %v86
    %v599 = vunpack.c.l.b16 %v87
    %v600 = vunpack.c.l.b16 %v88
    %v601 = vunpack.c.l.b16 %v89
    %v602 = vunpack.c.l.b16 %v90
    %v603 = vunpack.c.l.b16 %v91
    %v604 = vunpack.c.l.b16 %v92
    %v605 = vunpack.c.l.b16 %v93
    %v606 = vunpack.c.l.b16 %v94
    %v607 = vunpack.c.l.b16 %v95
    %v608 = vunpack.c.l.b16 %v96
    %v609 = vunpack.c.l.b16 %v97
    %v610 = vunpack.c.l.b16 %v98
    %v611 = vunpack.c.l.b16 %v99
    %v612 = vunpack.c.l.b16 %v100
    %v613 = vunpack.c.l.b16 %v101
    %v614 = vunpack.c.l.b16 %v102
    %v615 = vunpack.c.l.b16 %v103
    %v616 = vunpack.c.l.b16 %v104
    %v617 = vunpack.c.l.b16 %v105
    %v618 = vunpack.c.l.b16 %v106
    %v619 = vunpack.c.l.b16 %v107
    %v620 = vunpack.c.l.b16 %v108
    %v621 = vunpack.c.l.b16 %v109
    %v622 = vunpack.c.l.b16 %v110
    %v623 = vunpack.c.l.b16 %v111
    %v624 = vunpack.c.l.b16 %v112
    %v625 = vunpack.c.l.b16 %v113
    %v626 = vunpack.c.l.b16 %v114
    %v627 = vunpack.c.l.b16 %v115
    %v628 = vunpack.c.l.b16 %v116
    %v629 = vunpack.c.l.b16 %v117
    %v630 = vunpack.c.l.b16 %v118
    %v631 = vunpack.c.l.b16 %v119
    %v632 = vunpack.c.l.b16 %v120
    %v633 = vunpack.c.l.b16 %v121
    %v634 = vunpack.c.l.b16 %v122
    %v635 = vunpack.c.l.b16 %v123
    %v636 = vunpack.c.l.b16 %v124
    %v637 = vunpack.c.l.b16 %v125
    %v638 = vunpack.c.l.b16 %v126
    %v639 = vunpack.c.l.b16 %v127
    %v640 = vunpack.c.l.b16 %v128
    %v641 = vunpack.c.l.b16 %v129
    %v642 = vunpack.c.l.b16 %v130
    %v643 = vunpack.c.l.b16 %v131
    %v644 = vunpack.c.l.b16 %v132
    %v645 = vunpack.c.l.b16 %v133
    %v646 = vunpack.c.l.b16 %v134
    %v647 = vunpack.c.l.b16 %v135
    %v648 = vunpack.c.l.b16 %v136
    %v649 = vunpack.c.l.b16 %v137
    %v650 = vunpack.c.l.b16 %v138
    %v651 = vunpack.c.l.b16 %v139
    %v652 = vunpack.c.l.b16 %v140
    %v653 = vunpack.c.l.b16 %v141
    %v654 = vunpack.c.l.b16 %v142
    %v655 = vunpack.c.l.b16 %v143
    %v656 = vunpack.c.l.b16 %v144
    %v657 = vunpack.c.l.b16 %v145
    %v658 = vunpack.c.l.b16 %v146
    %v659 = vunpack.c.l.b16 %v147
    %v660 = vunpack.c.l.b16 %v148
    %v661 = vunpack.c.l.b16 %v149
    %v662 = vunpack.c.l.b16 %v150
    %v663 = vunpack.c.l.b16 %v151
    %v664 = vunpack.c.l.b16 %v152
    %v665 = vunpack.c.l.b16 %v153
    %v666 = vunpack.c.l.b16 %v154
    %v667 = vunpack.c.l.b16 %v155
    %v668 = vunpack.c.l.b16 %v156
    %v669 = vunpack.c.l.b16 %v157
    %v670 = vunpack.c.l.b16 %v158
    %v671 = vunpack.c.l.b16 %v159
    %v672 = vunpack.c.l.b16 %v160
    %v673 = vunpack.c.l.b16 %v161
    %v674 = vunpack.c.l.b16 %v162
    %v675 = vunpack.c.l.b16 %v163
    %v676 = vunpack.c.l.b16 %v164
    %v677 = vunpack.c.l.b16 %v165
    %v678 = vunpack.c.l.b16 %v166
    %v679 = vunpack.c.l.b16 %v167
    %v680 = vunpack.c.l.b16 %v168
    %v681 = vunpack.c.l.b16 %v169
    %v682 = vunpack.c.l.b16 %v170
    %v683 = vunpack.c.l.b16 %v171
    %v684 = vunpack.c.l.b16 %v172
    %v685 = vunpack.c.l.b16 %v173
    %v686 = vunpack.c.l.b16 %v174
    %v687 = vunpack.c.l.b16 %v175
    %v688 = vunpack.c.l.b16 %v176
    %v689 = vunpack.c.l.b16 %v177
    %v690 = vunpack.c.l.b16 %v178
    %v691 = vunpack.c.l.b16 %v179
    %v692 = vunpack.c.l.b16 %v180
    %v693 = vunpack.c.l.b16 %v181
    %v694 = vunpack.c.l.b16 %v182
    %v695 = vunpack.c.l.b16 %v183
    %v696 = vunpack.c.l.b16 %v184
    %v697 = vunpack.c.l.b16 %v185
    %v698 = vunpack.c.l.b16 %v186
    %v699 = vunpack.c.l.b16 %v187
    %v700 = vunpack.c.l.b16 %v188
    %v701 = vunpack.c.l.b16 %v189
    %v702 = vunpack.c.l.b16 %v190
    %v703 = vunpack.c.l.b16 %v191
    %v704 = vunpack.c.l.b16 %v192
    %v705 = vunpack.c.l.b16 %v193
    %v706 = vunpack.c.l.b16 %v194
    %v707 = vunpack.c.l.b16 %v195
    %v708 = vunpack.c.l.b16 %v196
    %v709 = vunpack.c.l.b16 %v197
    %v710 = vunpack.c.l.b16 %v198
    %v711 = vunpack.c.l.b16 %v199
    %v712 = vunpack.c.l.b16 %v200
    %v713 = vunpack.c.l.b16 %v201
    %v714 = vunpack.c.l.b16 %v202
    %v715 = vunpack.c.l.b16 %v203
    %v716 = vunpack.c.l.b16 %v204
    %v717 = vunpack.c.l.b16 %v205
    %v718 = vunpack.c.l.b16 %v206
    %v719 = vunpack.c.l.b16 %v207
    %v720 = vunpack.c.l.b16 %v208
    %v721 = vunpack.c.l.b16 %v209
    %v722 = vunpack.c.l.b16 %v210
    %v723 = vunpack.c.l.b16 %v211
    %v724 = vunpack.c.l.b16 %v212
    %v725 = vunpack.c.l.b16 %v213
    %v726 = vunpack.c.l.b16 %v214
    %v727 = vunpack.c.l.b16 %v215
    %v728 = vunpack.c.l.b16 %v216
    %v729 = vunpack.c.l.b16 %v217
    %v730 = vunpack.c.l.b16 %v218
    %v731 = vunpack.c.l.b16 %v219
    %v732 = vunpack.c.l.b16 %v220
    %v733 = vunpack.c.l.b16 %v221
    %v734 = vunpack.c.l.b16 %v222
    %v735 = vunpack.c.l.b16 %v223
    %v736 = vunpack.c.l.b16 %v224
    %v737 = vunpack.c.l.b16 %v225
    %v738 = vunpack.c.l.b16 %v226
    %v739 = vunpack.c.l.b16 %v227
    %v740 = vunpack.c.l.b16 %v228
    %v741 = vunpack.c.l.b16 %v229
    %v742 = vunpack.c.l.b16 %v230
    %v743 = vunpack.c.l.b16 %v231
    %v744 = vunpack.c.l.b16 %v232
    %v745 = vunpack.c.l.b16 %v233
    %v746 = vunpack.c.l.b16 %v234
    %v747 = vunpack.c.l.b16 %v235
    %v748 = vunpack.c.l.b16 %v236
    %v749 = vunpack.c.l.b16 %v237
    %v750 = vunpack.c.l.b16 %v238
    %v751 = vunpack.c.l.b16 %v239
    %v752 = vunpack.c.l.b16 %v240
    %v753 = vunpack.c.l.b16 %v241
    %v754 = vunpack.c.l.b16 %v242
    %v755 = vunpack.c.l.b16 %v243
    %v756 = vunpack.c.l.b16 %v244
    %v757 = vunpack.c.l.b16 %v245
    %v758 = vunpack.c.l.b16 %v246
    %v759 = vunpack.c.l.b16 %v247
    %v760 = vunpack.c.l.b16 %v248
    %v761 = vunpack.c.l.b16 %v249
    %v762 = vunpack.c.l.b16 %v250
    %v763 = vunpack.c.l.b16 %v251
    %v764 = vunpack.c.l.b16 %v252
    %v765 = vunpack.c.l.b16 %v253
    %v766 = vunpack.c.l.b16 %v254
    %v767 = vunpack.c.l.b16 %v255
    %v768 = vunpack.c.l.b16 %v256
    %v769 = vunpack.c.l.b16 %v257
    %v770 = vunpack.c.l.b16 %v258
    %v771 = vunpack.c.l.b16 %v259
    %v772 = vunpack.c.l.b16 %v260
    %v773 = vunpack.c.l.b16 %v261
    %v774 = vunpack.c.l.b16 %v262
    %v775 = vunpack.c.l.b16 %v263
    %v776 = vunpack.c.l.b16 %v264
    %v777 = vunpack.c.l.b16 %v265
    %v778 = vunpack.c.l.b16 %v266
    %v779 = vunpack.c.l.b16 %v267
    %v780 = vunpack.c.l.b16 %v268
    %v781 = vunpack.c.l.b16 %v269
    %v782 = vunpack.c.l.b16 %v270
    %v783 = vunpack.c.l.b16 %v271
    %v784 = vunpack.c.l.b16 %v272
    %v785 = vunpack.c.l.b16 %v273
    %v786 = vunpack.c.l.b16 %v274
    %v787 = vunpack.c.l.b16 %v275
    %v788 = vunpack.c.l.b16 %v276
    %v789 = vunpack.c.l.b16 %v277
    %v790 = vunpack.c.l.b16 %v278
    %v791 = vunpack.c.l.b16 %v279
    %v792 = vunpack.c.l.b16 %v280
    %v793 = vunpack.c.l.b16 %v281
    %v794 = vunpack.c.l.b16 %v282
    %v795 = vunpack.c.l.b16 %v283
    %v796 = vunpack.c.l.b16 %v284
    %v797 = vunpack.c.l.b16 %v285
    %v798 = vunpack.c.l.b16 %v286
    %v799 = vunpack.c.l.b16 %v287
    %v800 = vunpack.c.l.b16 %v288
    %v801 = vunpack.c.l.b16 %v289
    %v802 = vunpack.c.l.b16 %v290
    %v803 = vunpack.c.l.b16 %v291
    %v804 = vunpack.c.l.b16 %v292
    %v805 = vunpack.c.l.b16 %v293
    %v806 = vunpack.c.l.b16 %v294
    %v807 = vunpack.c.l.b16 %v295
    %v808 = vunpack.c.l.b16 %v296
    %v809 = vunpack.c.l.b16 %v297
    %v810 = vunpack.c.l.b16 %v298
    %v811 = vunpack.c.l.b16 %v299
    %v812 = vunpack.c.l.b16 %v300
    %v813 = vunpack.c.l.b16 %v301
    %v814 = vunpack.c.l.b16 %v302
    %v815 = vunpack.c.l.b16 %v303
    %v816 = vunpack.c.l.b16 %v304
    %v817 = vunpack.c.l.b16 %v305
    %v818 = vunpack.c.l.b16 %v306
    %v819 = vunpack.c.l.b16 %v307
    %v820 = vunpack.c.l.b16 %v308
    %v821 = vunpack.c.l.b16 %v309
    %v822 = vunpack.c.l.b16 %v310
    %v823 = vunpack.c.l.b16 %v311
    %v824 = vunpack.c.l.b16 %v312
    %v825 = vunpack.c.l.b16 %v313
    %v826 = vunpack.c.l.b16 %v314
    %v827 = vunpack.c.l.b16 %v315
    %v828 = vunpack.c.l.b16 %v316
    %v829 = vunpack.c.l.b16 %v317
    %v830 = vpack.c.b16 %v575, %v574
    %v831 = vpack.c.b16 %v577, %v576
    %v832 = vpack.c.b16 %v579, %v578
    %v833 = vpack.c.b16 %v581, %v580
    %v834 = vpack.c.b16 %v583, %v582
    %v835 = vpack.c.b16 %v585, %v584
    %v836 = vpack.c.b16 %v587, %v586
    %v837 = vpack.c.b16 %v589, %v588
    %v838 = vpack.c.b16 %v591, %v590
    %v839 = vpack.c.b16 %v593, %v592
    %v840 = vpack.c.b16 %v595, %v594
    %v841 = vpack.c.b16 %v597, %v596
    %v842 = vpack.c.b16 %v599, %v598
    %v843 = vpack.c.b16 %v601, %v600
    %v844 = vpack.c.b16 %v603, %v602
    %v845 = vpack.c.b16 %v605, %v604
    %v846 = vpack.c.b16 %v607, %v606
    %v847 = vpack.c.b16 %v609, %v608
    %v848 = vpack.c.b16 %v611, %v610
    %v849 = vpack.c.b16 %v613, %v612
    %v850 = vpack.c.b16 %v615, %v614
    %v851 = vpack.c.b16 %v617, %v616
    %v852 = vpack.c.b16 %v619, %v618
    %v853 = vpack.c.b16 %v621, %v620
    %v854 = vpack.c.b16 %v623, %v622
    %v855 = vpack.c.b16 %v625, %v624
    %v856 = vpack.c.b16 %v627, %v626
    %v857 = vpack.c.b16 %v629, %v628
    %v858 = vpack.c.b16 %v631, %v630
    %v859 = vpack.c.b16 %v633, %v632
    %v860 = vpack.c.b16 %v635, %v634
    %v861 = vpack.c.b16 %v637, %v636
    %v862 = vpack.c.b16 %v639, %v638
    %v863 = vpack.c.b16 %v641, %v640
    %v864 = vpack.c.b16 %v643, %v642
    %v865 = vpack.c.b16 %v645, %v644
    %v866 = vpack.c.b16 %v647, %v646
    %v867 = vpack.c.b16 %v649, %v648
    %v868 = vpack.c.b16 %v651, %v650
    %v869 = vpack.c.b16 %v653, %v652
    %v870 = vpack.c.b16 %v655, %v654
    %v871 = vpack.c.b16 %v657, %v656
    %v872 = vpack.c.b16 %v659, %v658
    %v873 = vpack.c.b16 %v661, %v660
    %v874 = vpack.c.b16 %v663, %v662
    %v875 = vpack.c.b16 %v665, %v664
    %v876 = vpack.c.b16 %v667, %v666
    %v877 = vpack.c.b16 %v669, %v668
    %v878 = vpack.c.b16 %v671, %v670
    %v879 = vpack.c.b16 %v673, %v672
    %v880 = vpack.c.b16 %v675, %v674
    %v881 = vpack.c.b16 %v677, %v676
    %v882 = vpack.c.b16 %v679, %v678
    %v883 = vpack.c.b16 %v681, %v680
    %v884 = vpack.c.b16 %v683, %v682
    %v885 = vpack.c.b16 %v685, %v684
    %v886 = vpack.c.b16 %v687, %v686
    %v887 = vpack.c.b16 %v689, %v688
    %v888 = vpack.c.b16 %v691, %v690
    %v889 = vpack.c.b16 %v693, %v692
    %v890 = vpack.c.b16 %v695, %v694
    %v891 = vpack.c.b16 %v697, %v696
    %v892 = vpack.c.b16 %v699, %v698
    %v893 = vpack.c.b16 %v701, %v700
    %v894 = vpack.c.b16 %v703, %v702
    %v895 = vpack.c.b16 %v705, %v704
    %v896 = vpack.c.b16 %v707, %v706
    %v897 = vpack.c.b16 %v709, %v708
    %v898 = vpack.c.b16 %v711, %v710
    %v899 = vpack.c.b16 %v713, %v712
    %v900 = vpack.c.b16 %v715, %v714
    %v901 = vpack.c.b16 %v717, %v716
    %v902 = vpack.c.b16 %v719, %v718
    %v903 = vpack.c.b16 %v721, %v720
    %v904 = vpack.c.b16 %v723, %v722
    %v905 = vpack.c.b16 %v725, %v724
    %v906 = vpack.c.b16 %v727, %v726
    %v907 = vpack.c.b16 %v729, %v728
    %v908 = vpack.c.b16 %v731, %v730
    %v909 = vpack.c.b16 %v733, %v732
    %v910 = vpack.c.b16 %v735, %v734
    %v911 = vpack.c.b16 %v737, %v736
    %v912 = vpack.c.b16 %v739, %v738
    %v913 = vpack.c.b16 %v741, %v740
    %v914 = vpack.c.b16 %v743, %v742
    %v915 = vpack.c.b16 %v745, %v744
    %v916 = vpack.c.b16 %v747, %v746
    %v917 = vpack.c.b16 %v749, %v748
    %v918 = vpack.c.b16 %v751, %v750
    %v919 = vpack.c.b16 %v753, %v752
    %v920 = vpack.c.b16 %v755, %v754
    %v921 = vpack.c.b16 %v757, %v756
    %v922 = vpack.c.b16 %v759, %v758
    %v923 = vpack.c.b16 %v761, %v760
    %v924 = vpack.c.b16 %v763, %v762
    %v925 = vpack.c.b16 %v765, %v764
    %v926 = vpack.c.b16 %v767, %v766
    %v927 = vpack.c.b16 %v769, %v768
    %v928 = vpack.c.b16 %v771, %v770
    %v929 = vpack.c.b16 %v773, %v772
    %v930 = vpack.c.b16 %v775, %v774
    %v931 = vpack.c.b16 %v777, %v776
    %v932 = vpack.c.b16 %v779, %v778
    %v933 = vpack.c.b16 %v781, %v780
    %v934 = vpack.c.b16 %v783, %v782
    %v935 = vpack.c.b16 %v785, %v784
    %v936 = vpack.c.b16 %v787, %v786
    %v937 = vpack.c.b16 %v789, %v788
    %v938 = vpack.c.b16 %v791, %v790
    %v939 = vpack.c.b16 %v793, %v792
    %v940 = vpack.c.b16 %v795, %v794
    %v941 = vpack.c.b16 %v797, %v796
    %v942 = vpack.c.b16 %v799, %v798
    %v943 = vpack.c.b16 %v801, %v800
    %v944 = vpack.c.b16 %v803, %v802
    %v945 = vpack.c.b16 %v805, %v804
    %v946 = vpack.c.b16 %v807, %v806
    %v947 = vpack.c.b16 %v809, %v808
    %v948 = vpack.c.b16 %v811, %v810
    %v949 = vpack.c.b16 %v813, %v812
    %v950 = vpack.c.b16 %v815, %v814
    %v951 = vpack.c.b16 %v817, %v816
    %v952 = vpack.c.b16 %v819, %v818
    %v953 = vpack.c.b16 %v821, %v820
    %v954 = vpack.c.b16 %v823, %v822
    %v955 = vpack.c.b16 %v825, %v824
    %v956 = vpack.c.b16 %v827, %v826
    %v957 = vpack.c.b16 %v829, %v828
    %1086 = vmatprep.subr.bf16.mxu0 0
    %1087 = vmatpush1.bf16.msra.mxu0 %v837
    %1088 = vmatprep.subr.bf16.mxu0 0
    %1089 = vmatpush1.bf16.msra.mxu0 %v836
    %1090 = vmatprep.subr.bf16.mxu0 0
    %1091 = vmatpush1.bf16.msra.mxu0 %v835
    %1092 = vmatprep.subr.bf16.mxu0 0
    %1093 = vmatpush1.bf16.msra.mxu0 %v834
    %1094 = vmatprep.subr.bf16.mxu0 0
    %1095 = vmatpush1.bf16.msra.mxu0 %v833
    %1096 = vmatprep.subr.bf16.mxu0 0
    %1097 = vmatpush1.bf16.msra.mxu0 %v832
    %1098 = vmatprep.subr.bf16.mxu0 0
    %1099 = vmatpush1.bf16.msra.mxu0 %v831
    %1100 = vmatprep.subr.bf16.mxu0 0
    %1101 = vmatpush1.bf16.msra.mxu0 %v830
    %1102 = vmatprep.subr.bf16.mxu0 0
    %1103 = vmatpush2.bf16.msra.mxu0 %v845
    %1104 = vmatprep.subr.bf16.mxu0 0
    %1105 = vmatpush2.bf16.msra.mxu0 %v844
    %1106 = vmatprep.subr.bf16.mxu0 0
    %1107 = vmatpush2.bf16.msra.mxu0 %v843
    %1108 = vmatprep.subr.bf16.mxu0 0
    %1109 = vmatpush2.bf16.msra.mxu0 %v842
    %1110 = vmatprep.subr.bf16.mxu0 0
    %1111 = vmatpush2.bf16.msra.mxu0 %v841
    %1112 = vmatprep.subr.bf16.mxu0 0
    %1113 = vmatpush2.bf16.msra.mxu0 %v840
    %1114 = vmatprep.subr.bf16.mxu0 0
    %1115 = vmatpush2.bf16.msra.mxu0 %v839
    %1116 = vmatprep.subr.bf16.mxu0 0
    %1117 = vmatpush2.bf16.msra.mxu0 %v838
    %1118 = vmatprep.mubr.bf16.mxu0 %v47
    %1119 = vmatmul.mubr.bf16.gmra.mxu0 %v46
    %v1120 = vpop.f32.mrf.mxu0
    %v1121 = vadd.f32 0.0, %v1120
    %v1122 = vpop.f32.mrf.mxu0
    %v1123 = vpop.f32.mrf.mxu0
    %v1124 = vpop.f32.mrf.mxu0
    %1125 = vdwg.mxu0
    %1126 = vmatprep.subr.bf16.mxu0 0
    %1127 = vmatpush1.bf16.msra.mxu0 %v853
    %1128 = vmatprep.subr.bf16.mxu0 0
    %1129 = vmatpush1.bf16.msra.mxu0 %v852
    %1130 = vmatprep.subr.bf16.mxu0 0
    %1131 = vmatpush1.bf16.msra.mxu0 %v851
    %1132 = vmatprep.subr.bf16.mxu0 0
    %1133 = vmatpush1.bf16.msra.mxu0 %v850
    %1134 = vmatprep.subr.bf16.mxu0 0
    %1135 = vmatpush1.bf16.msra.mxu0 %v849
    %1136 = vmatprep.subr.bf16.mxu0 0
    %1137 = vmatpush1.bf16.msra.mxu0 %v848
    %1138 = vmatprep.subr.bf16.mxu0 0
    %1139 = vmatpush1.bf16.msra.mxu0 %v847
    %1140 = vmatprep.subr.bf16.mxu0 0
    %1141 = vmatpush1.bf16.msra.mxu0 %v846
    %1142 = vmatprep.subr.bf16.mxu0 0
    %1143 = vmatpush2.bf16.msra.mxu0 %v861
    %1144 = vmatprep.subr.bf16.mxu0 0
    %1145 = vmatpush2.bf16.msra.mxu0 %v860
    %1146 = vmatprep.subr.bf16.mxu0 0
    %1147 = vmatpush2.bf16.msra.mxu0 %v859
    %1148 = vmatprep.subr.bf16.mxu0 0
    %1149 = vmatpush2.bf16.msra.mxu0 %v858
    %1150 = vmatprep.subr.bf16.mxu0 0
    %1151 = vmatpush2.bf16.msra.mxu0 %v857
    %1152 = vmatprep.subr.bf16.mxu0 0
    %1153 = vmatpush2.bf16.msra.mxu0 %v856
    %1154 = vmatprep.subr.bf16.mxu0 0
    %1155 = vmatpush2.bf16.msra.mxu0 %v855
    %1156 = vmatprep.subr.bf16.mxu0 0
    %1157 = vmatpush2.bf16.msra.mxu0 %v854
    %1158 = vmatprep.mubr.bf16.mxu0 %v49
    %1159 = vmatmul.mubr.bf16.gmra.mxu0 %v48
    %v1160 = vpop.f32.mrf.mxu0
    %v1161 = vadd.f32 %v1121, %v1160
    %v1162 = vpop.f32.mrf.mxu0
    %v1163 = vpop.f32.mrf.mxu0
    %v1164 = vpop.f32.mrf.mxu0
    %1165 = vdwg.mxu0
    %1166 = vmatprep.subr.bf16.mxu0 0
    %1167 = vmatpush1.bf16.msra.mxu0 %v869
    %1168 = vmatprep.subr.bf16.mxu0 0
    %1169 = vmatpush1.bf16.msra.mxu0 %v868
    %1170 = vmatprep.subr.bf16.mxu0 0
    %1171 = vmatpush1.bf16.msra.mxu0 %v867
    %1172 = vmatprep.subr.bf16.mxu0 0
    %1173 = vmatpush1.bf16.msra.mxu0 %v866
    %1174 = vmatprep.subr.bf16.mxu0 0
    %1175 = vmatpush1.bf16.msra.mxu0 %v865
    %1176 = vmatprep.subr.bf16.mxu0 0
    %1177 = vmatpush1.bf16.msra.mxu0 %v864
    %1178 = vmatprep.subr.bf16.mxu0 0
    %1179 = vmatpush1.bf16.msra.mxu0 %v863
    %1180 = vmatprep.subr.bf16.mxu0 0
    %1181 = vmatpush1.bf16.msra.mxu0 %v862
    %1182 = vmatprep.subr.bf16.mxu0 0
    %1183 = vmatpush2.bf16.msra.mxu0 %v877
    %1184 = vmatprep.subr.bf16.mxu0 0
    %1185 = vmatpush2.bf16.msra.mxu0 %v876
    %1186 = vmatprep.subr.bf16.mxu0 0
    %1187 = vmatpush2.bf16.msra.mxu0 %v875
    %1188 = vmatprep.subr.bf16.mxu0 0
    %1189 = vmatpush2.bf16.msra.mxu0 %v874
    %1190 = vmatprep.subr.bf16.mxu0 0
    %1191 = vmatpush2.bf16.msra.mxu0 %v873
    %1192 = vmatprep.subr.bf16.mxu0 0
    %1193 = vmatpush2.bf16.msra.mxu0 %v872
    %1194 = vmatprep.subr.bf16.mxu0 0
    %1195 = vmatpush2.bf16.msra.mxu0 %v871
    %1196 = vmatprep.subr.bf16.mxu0 0
    %1197 = vmatpush2.bf16.msra.mxu0 %v870
    %1198 = vmatprep.mubr.bf16.mxu0 %v51
    %1199 = vmatmul.mubr.bf16.gmra.mxu0 %v50
    %v1200 = vpop.f32.mrf.mxu0
    %v1201 = vadd.f32 %v1161, %v1200
    %v1202 = vpop.f32.mrf.mxu0
    %v1203 = vpop.f32.mrf.mxu0
    %v1204 = vpop.f32.mrf.mxu0
    %1205 = vdwg.mxu0
    %1206 = vmatprep.subr.bf16.mxu0 0
    %1207 = vmatpush1.bf16.msra.mxu0 %v885
    %1208 = vmatprep.subr.bf16.mxu0 0
    %1209 = vmatpush1.bf16.msra.mxu0 %v884
    %1210 = vmatprep.subr.bf16.mxu0 0
    %1211 = vmatpush1.bf16.msra.mxu0 %v883
    %1212 = vmatprep.subr.bf16.mxu0 0
    %1213 = vmatpush1.bf16.msra.mxu0 %v882
    %1214 = vmatprep.subr.bf16.mxu0 0
    %1215 = vmatpush1.bf16.msra.mxu0 %v881
    %1216 = vmatprep.subr.bf16.mxu0 0
    %1217 = vmatpush1.bf16.msra.mxu0 %v880
    %1218 = vmatprep.subr.bf16.mxu0 0
    %1219 = vmatpush1.bf16.msra.mxu0 %v879
    %1220 = vmatprep.subr.bf16.mxu0 0
    %1221 = vmatpush1.bf16.msra.mxu0 %v878
    %1222 = vmatprep.subr.bf16.mxu0 0
    %1223 = vmatpush2.bf16.msra.mxu0 %v893
    %1224 = vmatprep.subr.bf16.mxu0 0
    %1225 = vmatpush2.bf16.msra.mxu0 %v892
    %1226 = vmatprep.subr.bf16.mxu0 0
    %1227 = vmatpush2.bf16.msra.mxu0 %v891
    %1228 = vmatprep.subr.bf16.mxu0 0
    %1229 = vmatpush2.bf16.msra.mxu0 %v890
    %1230 = vmatprep.subr.bf16.mxu0 0
    %1231 = vmatpush2.bf16.msra.mxu0 %v889
    %1232 = vmatprep.subr.bf16.mxu0 0
    %1233 = vmatpush2.bf16.msra.mxu0 %v888
    %1234 = vmatprep.subr.bf16.mxu0 0
    %1235 = vmatpush2.bf16.msra.mxu0 %v887
    %1236 = vmatprep.subr.bf16.mxu0 0
    %1237 = vmatpush2.bf16.msra.mxu0 %v886
    %1238 = vmatprep.mubr.bf16.mxu0 %v53
    %1239 = vmatmul.mubr.bf16.gmra.mxu0 %v52
    %v1240 = vpop.f32.mrf.mxu0
    %v1241 = vadd.f32 %v1201, %v1240
    %v1242 = vpop.f32.mrf.mxu0
    %v1243 = vpop.f32.mrf.mxu0
    %v1244 = vpop.f32.mrf.mxu0
    %1245 = vdwg.mxu0
    %1246 = vmatprep.subr.bf16.mxu0 0
    %1247 = vmatpush1.bf16.msra.mxu0 %v901
    %1248 = vmatprep.subr.bf16.mxu0 0
    %1249 = vmatpush1.bf16.msra.mxu0 %v900
    %1250 = vmatprep.subr.bf16.mxu0 0
    %1251 = vmatpush1.bf16.msra.mxu0 %v899
    %1252 = vmatprep.subr.bf16.mxu0 0
    %1253 = vmatpush1.bf16.msra.mxu0 %v898
    %1254 = vmatprep.subr.bf16.mxu0 0
    %1255 = vmatpush1.bf16.msra.mxu0 %v897
    %1256 = vmatprep.subr.bf16.mxu0 0
    %1257 = vmatpush1.bf16.msra.mxu0 %v896
    %1258 = vmatprep.subr.bf16.mxu0 0
    %1259 = vmatpush1.bf16.msra.mxu0 %v895
    %1260 = vmatprep.subr.bf16.mxu0 0
    %1261 = vmatpush1.bf16.msra.mxu0 %v894
    %1262 = vmatprep.subr.bf16.mxu0 0
    %1263 = vmatpush2.bf16.msra.mxu0 %v909
    %1264 = vmatprep.subr.bf16.mxu0 0
    %1265 = vmatpush2.bf16.msra.mxu0 %v908
    %1266 = vmatprep.subr.bf16.mxu0 0
    %1267 = vmatpush2.bf16.msra.mxu0 %v907
    %1268 = vmatprep.subr.bf16.mxu0 0
    %1269 = vmatpush2.bf16.msra.mxu0 %v906
    %1270 = vmatprep.subr.bf16.mxu0 0
    %1271 = vmatpush2.bf16.msra.mxu0 %v905
    %1272 = vmatprep.subr.bf16.mxu0 0
    %1273 = vmatpush2.bf16.msra.mxu0 %v904
    %1274 = vmatprep.subr.bf16.mxu0 0
    %1275 = vmatpush2.bf16.msra.mxu0 %v903
    %1276 = vmatprep.subr.bf16.mxu0 0
    %1277 = vmatpush2.bf16.msra.mxu0 %v902
    %1278 = vmatprep.mubr.bf16.mxu0 %v55
    %1279 = vmatmul.mubr.bf16.gmra.mxu0 %v54
    %v1280 = vpop.f32.mrf.mxu0
    %v1281 = vadd.f32 %v1241, %v1280
    %v1282 = vpop.f32.mrf.mxu0
    %v1283 = vpop.f32.mrf.mxu0
    %v1284 = vpop.f32.mrf.mxu0
    %1285 = vdwg.mxu0
    %1286 = vmatprep.subr.bf16.mxu0 0
    %1287 = vmatpush1.bf16.msra.mxu0 %v917
    %1288 = vmatprep.subr.bf16.mxu0 0
    %1289 = vmatpush1.bf16.msra.mxu0 %v916
    %1290 = vmatprep.subr.bf16.mxu0 0
    %1291 = vmatpush1.bf16.msra.mxu0 %v915
    %1292 = vmatprep.subr.bf16.mxu0 0
    %1293 = vmatpush1.bf16.msra.mxu0 %v914
    %1294 = vmatprep.subr.bf16.mxu0 0
    %1295 = vmatpush1.bf16.msra.mxu0 %v913
    %1296 = vmatprep.subr.bf16.mxu0 0
    %1297 = vmatpush1.bf16.msra.mxu0 %v912
    %1298 = vmatprep.subr.bf16.mxu0 0
    %1299 = vmatpush1.bf16.msra.mxu0 %v911
    %1300 = vmatprep.subr.bf16.mxu0 0
    %1301 = vmatpush1.bf16.msra.mxu0 %v910
    %1302 = vmatprep.subr.bf16.mxu0 0
    %1303 = vmatpush2.bf16.msra.mxu0 %v925
    %1304 = vmatprep.subr.bf16.mxu0 0
    %1305 = vmatpush2.bf16.msra.mxu0 %v924
    %1306 = vmatprep.subr.bf16.mxu0 0
    %1307 = vmatpush2.bf16.msra.mxu0 %v923
    %1308 = vmatprep.subr.bf16.mxu0 0
    %1309 = vmatpush2.bf16.msra.mxu0 %v922
    %1310 = vmatprep.subr.bf16.mxu0 0
    %1311 = vmatpush2.bf16.msra.mxu0 %v921
    %1312 = vmatprep.subr.bf16.mxu0 0
    %1313 = vmatpush2.bf16.msra.mxu0 %v920
    %1314 = vmatprep.subr.bf16.mxu0 0
    %1315 = vmatpush2.bf16.msra.mxu0 %v919
    %1316 = vmatprep.subr.bf16.mxu0 0
    %1317 = vmatpush2.bf16.msra.mxu0 %v918
    %1318 = vmatprep.mubr.bf16.mxu0 %v57
    %1319 = vmatmul.mubr.bf16.gmra.mxu0 %v56
    %v1320 = vpop.f32.mrf.mxu0
    %v1321 = vadd.f32 %v1281, %v1320
    %v1322 = vpop.f32.mrf.mxu0
    %v1323 = vpop.f32.mrf.mxu0
    %v1324 = vpop.f32.mrf.mxu0
    %1325 = vdwg.mxu0
    %1326 = vmatprep.subr.bf16.mxu0 0
    %1327 = vmatpush1.bf16.msra.mxu0 %v933
    %1328 = vmatprep.subr.bf16.mxu0 0
    %1329 = vmatpush1.bf16.msra.mxu0 %v932
    %1330 = vmatprep.subr.bf16.mxu0 0
    %1331 = vmatpush1.bf16.msra.mxu0 %v931
    %1332 = vmatprep.subr.bf16.mxu0 0
    %1333 = vmatpush1.bf16.msra.mxu0 %v930
    %1334 = vmatprep.subr.bf16.mxu0 0
    %1335 = vmatpush1.bf16.msra.mxu0 %v929
    %1336 = vmatprep.subr.bf16.mxu0 0
    %1337 = vmatpush1.bf16.msra.mxu0 %v928
    %1338 = vmatprep.subr.bf16.mxu0 0
    %1339 = vmatpush1.bf16.msra.mxu0 %v927
    %1340 = vmatprep.subr.bf16.mxu0 0
    %1341 = vmatpush1.bf16.msra.mxu0 %v926
    %1342 = vmatprep.subr.bf16.mxu0 0
    %1343 = vmatpush2.bf16.msra.mxu0 %v941
    %1344 = vmatprep.subr.bf16.mxu0 0
    %1345 = vmatpush2.bf16.msra.mxu0 %v940
    %1346 = vmatprep.subr.bf16.mxu0 0
    %1347 = vmatpush2.bf16.msra.mxu0 %v939
    %1348 = vmatprep.subr.bf16.mxu0 0
    %1349 = vmatpush2.bf16.msra.mxu0 %v938
    %1350 = vmatprep.subr.bf16.mxu0 0
    %1351 = vmatpush2.bf16.msra.mxu0 %v937
    %1352 = vmatprep.subr.bf16.mxu0 0
    %1353 = vmatpush2.bf16.msra.mxu0 %v936
    %1354 = vmatprep.subr.bf16.mxu0 0
    %1355 = vmatpush2.bf16.msra.mxu0 %v935
    %1356 = vmatprep.subr.bf16.mxu0 0
    %1357 = vmatpush2.bf16.msra.mxu0 %v934
    %1358 = vmatprep.mubr.bf16.mxu0 %v59
    %1359 = vmatmul.mubr.bf16.gmra.mxu0 %v58
    %v1360 = vpop.f32.mrf.mxu0
    %v1361 = vadd.f32 %v1321, %v1360
    %v1362 = vpop.f32.mrf.mxu0
    %v1363 = vpop.f32.mrf.mxu0
    %v1364 = vpop.f32.mrf.mxu0
    %1365 = vdwg.mxu0
    %1366 = vmatprep.subr.bf16.mxu0 0
    %1367 = vmatpush1.bf16.msra.mxu0 %v949
    %1368 = vmatprep.subr.bf16.mxu0 0
    %1369 = vmatpush1.bf16.msra.mxu0 %v948
    %1370 = vmatprep.subr.bf16.mxu0 0
    %1371 = vmatpush1.bf16.msra.mxu0 %v947
    %1372 = vmatprep.subr.bf16.mxu0 0
    %1373 = vmatpush1.bf16.msra.mxu0 %v946
    %1374 = vmatprep.subr.bf16.mxu0 0
    %1375 = vmatpush1.bf16.msra.mxu0 %v945
    %1376 = vmatprep.subr.bf16.mxu0 0
    %1377 = vmatpush1.bf16.msra.mxu0 %v944
    %1378 = vmatprep.subr.bf16.mxu0 0
    %1379 = vmatpush1.bf16.msra.mxu0 %v943
    %1380 = vmatprep.subr.bf16.mxu0 0
    %1381 = vmatpush1.bf16.msra.mxu0 %v942
    %1382 = vmatprep.subr.bf16.mxu0 0
    %1383 = vmatpush2.bf16.msra.mxu0 %v957
    %1384 = vmatprep.subr.bf16.mxu0 0
    %1385 = vmatpush2.bf16.msra.mxu0 %v956
    %1386 = vmatprep.subr.bf16.mxu0 0
    %1387 = vmatpush2.bf16.msra.mxu0 %v955
    %1388 = vmatprep.subr.bf16.mxu0 0
    %1389 = vmatpush2.bf16.msra.mxu0 %v954
    %1390 = vmatprep.subr.bf16.mxu0 0
    %1391 = vmatpush2.bf16.msra.mxu0 %v953
    %1392 = vmatprep.subr.bf16.mxu0 0
    %1393 = vmatpush2.bf16.msra.mxu0 %v952
    %1394 = vmatprep.subr.bf16.mxu0 0
    %1395 = vmatpush2.bf16.msra.mxu0 %v951
    %1396 = vmatprep.subr.bf16.mxu0 0
    %1397 = vmatpush2.bf16.msra.mxu0 %v950
    %1398 = vmatprep.mubr.bf16.mxu0 %v61
    %1399 = vmatmul.mubr.bf16.gmra.mxu0 %v60
    %v1400 = vpop.f32.mrf.mxu0
    %v1401 = vadd.f32 %v1361, %v1400
    %v1402 = vpop.f32.mrf.mxu0
    %v1403 = vpop.f32.mrf.mxu0
    %v1404 = vpop.f32.mrf.mxu0
    %1405 = vdwg.mxu0
    %v1406 = vrot.slane %v1401, 4
    %v1407 = vadd.f32 %v1401, %v1406
    %v1408 = vrot.slane %v1407, 2
    %v1409 = vadd.f32 %v1407, %v1408
    %v1410 = vrot.slane %v1409, 1
    %v1411 = vadd.f32 %v1409, %v1410
    %v1412 = vrcp.pop 8.0
    %v1413 = vmul.f32 %v1411, %v1412
    %v1414 = vsub.f32 %v1401, %v1413
    %v1415 = vmul.f32 %v1414, %v1414
    %v1416 = vrot.slane %v1415, 4
    %v1417 = vadd.f32 %v1415, %v1416
    %v1418 = vrot.slane %v1417, 2
    %v1419 = vadd.f32 %v1417, %v1418
    %v1420 = vrot.slane %v1419, 1
    %v1421 = vadd.f32 %v1419, %v1420
    %v1422 = vmul.f32 %v1421, %v1412
    %v1423 = vadd.f32 %v1422, 1e-05
    %v1424 = vrsqrt.pop %v1423
    %v1425 = vld [vmem:[%s2] sm:$0x1]
    %v1426 = vmul.f32 %v1425, %v1424
    %v1427 = vld [vmem:[%s2 + $0x1] sm:$0x1]
    %v1428 = vmul.f32 %v1426, %v1413
    %v1429 = vsub.f32 %v1427, %v1428
    %v1430 = vlaneseq
    %v1431 = vshrl.u32 %v1430, 7
    %v1432 = vsub.s32 0, %v1431
    %v1433 = vrot.slane %v1426, %v1432
    %v1434 = vmul.f32 %v1401, %v1433
    %v1435 = vlaneseq
    %v1436 = vshrl.u32 %v1435, 7
    %v1437 = vsub.s32 0, %v1436
    %v1438 = vrot.slane %v1429, %v1437
    %v1439 = vadd.f32 %v1434, %v1438
    %1440 = vst [vmem:[#allocation5] sm:$0xff] %v1439
    // Predicated region
    $region18: #{encoder_forward.1} parent=1 // pred_check
      _
    $region19: #{encoder_forward.1} parent=1 // pred_check_branch
      %1442 = sbr.rel (0) target = $region21
    $region20: #{encoder_forward.1} parent=1 // pred_region
      %s1444 = ssub.s32 128, 128
      %1445 = vsyncadd [#allocation4], %s1444
      %s1447 = sshll.u32 [#allocation5], 4
      %s1448 = int_to_ptr.vmem [resolvable:$true] %s1447
      %1450 = dma.vmem_to_hbm [thread:$0]  %s1448, 128, %s3, [#allocation4]
    $region21: #{encoder_forward.1} parent=1 // pred_fallthru
      _
    // Predicated region
    $region22: #{encoder_forward.1} parent=1 // pred_check
      _
    $region23: #{encoder_forward.1} parent=1 // pred_check_branch
      %1452 = sbr.rel (0) target = $region25
    $region24: #{encoder_forward.1} parent=1 // pred_region
      %1453 = dma.done [#allocation4], 128
    $region25: #{encoder_forward.1} parent=1 // pred_fallthru
      _
    %1454 = vsyncpa [#allocation3], 1
    %1455 = vsyncpa [#allocation4], 1

</llo_original>
